<compile_context>
chip_gen: v7x
topology: tpu7x:2x2x1
jax: 0.10.0
libtpu: 0.0.40
codegen_flags: <defaults>
</compile_context>

<pallas_src>
import jax
import jax.numpy as jnp
import numpy as np
from jax import lax
from jax.experimental import pallas as pl
from jax.experimental.pallas import tpu as pltpu

# ----------------------------- configuration ------------------------------
T = 25          # sequence length    (module example: 100)
B = 4           # batch              (module example: 16)
C = 128         # embed_dim          (module example: 512) — lane-dense
K = 3           # depthwise kernel size (odd -> "same" length)
PAD = K // 2
EPS = 1e-5
N = T * B       # flattened rows; one time step == B rows in this layout

# Row tiling.  TM: rows per grid step (sweep 512–2048 at production sizes;
# roughly halve the v6e choice on v7x which has 64 MiB VMEM).  HB: halo block
# rows fetched from each neighboring tile (>= PAD*B, multiple of 16 for bf16).
TM = 32
HB = 16

assert HB >= PAD * B, "halo block must cover the depthwise receptive field"
assert TM % HB == 0 and TM % 16 == 0 and HB % 16 == 0

N_PAD = ((N + TM - 1) // TM) * TM   # rows padded up to a multiple of TM
NBLK = N_PAD // TM                  # grid size
NHB = N_PAD // HB                   # number of HB-row blocks
R = TM // HB                        # HB blocks per main tile

MXU_BF16 = C >= 256                 # bf16 matmul operands only at production C


# ------------------------------- kernel -----------------------------------
def conformer_conv_kernel(x_main_ref, x_prev_ref, x_next_ref,
                          gamma_ref, beta_ref, dw_w_ref, dw_b_ref,
                          pw_w_ref, pw_b_ref, o_ref):
    """One row tile per grid step.

    x_main_ref : (TM, C)  rows [i*TM, i*TM+TM)           (bf16)
    x_prev_ref : (HB, C)  rows [i*TM-HB, i*TM)  (clamped at i==0)
    x_next_ref : (HB, C)  rows [(i+1)*TM, (i+1)*TM+HB)  (clamped at last tile)
    gamma/beta : (1, C) f32     dw_w: (K, C) f32   dw_b: (1, C) f32
    pw_w       : (C, C) laid out (C_in, C_out)     pw_b: (1, C) f32
    o_ref      : (TM, C)  bf16
    """
    i = pl.program_id(0)
    W = TM + 2 * HB

    # Assemble the (HB + TM + HB, C) window; bf16 HBM -> f32 compute.
    win = jnp.concatenate(
        [x_prev_ref[...], x_main_ref[...], x_next_ref[...]], axis=0
    ).astype(jnp.float32)

    # ---- LayerNorm over channels (biased variance, eps=1e-5, matches torch).
    mean = jnp.mean(win, axis=-1, keepdims=True)
    var = jnp.mean((win - mean) ** 2, axis=-1, keepdims=True)
    y = (win - mean) * lax.rsqrt(var + EPS)
    y = y * gamma_ref[...] + beta_ref[...]

    # ---- zero every window row whose GLOBAL row index is outside [0, N).
    # One (W,1) iota + compare handles: conv zero time-padding, row padding
    # up to N_PAD, and the clamped neighbor blocks at the first/last tile.
    g = lax.broadcasted_iota(jnp.int32, (W, 1), 0) + (i * TM - HB)
    y = jnp.where((g >= 0) & (g < N), y, 0.0)

    # ---- depthwise conv along time via static halo slices.
    # out[t] = sum_k w[k] * in[t + k - PAD]; a time shift dt is a row shift
    # dt*B, and output rows are window rows [HB, HB+TM).
    w = dw_w_ref[...]                                   # (K, C), loaded once
    acc = y[HB:HB + TM, :] * w[PAD:PAD + 1, :]          # center tap
    for k in range(K):                                  # K small & static
        if k == PAD:
            continue
        off = HB + (k - PAD) * B
        acc = acc + y[off:off + TM, :] * w[k:k + 1, :]
    acc = acc + dw_b_ref[...]

    # ---- activation (ReLU)   TODO(synk): module passes `activation` in.
    acc = jnp.maximum(acc, 0.0)

    # ---- pointwise 1x1 conv == channel matmul on the MXU (f32 accumulation;
    # operands are bf16 only when the wrapper cast pw_w to bf16, i.e. C>=256).
    out = jnp.dot(acc.astype(pw_w_ref.dtype), pw_w_ref[...],
                  preferred_element_type=jnp.float32)
    out = out + pw_b_ref[...]

    o_ref[...] = out.astype(o_ref.dtype)


# ------------------------------- wrapper -----------------------------------
def conformer_conv_block(x_tbc, gamma, beta, dw_w, dw_b, pw_w, pw_b):
    """x_tbc: (T, B, C).  Weights in torch shapes (conv singleton dims squeezed):
       gamma/beta (C,), dw_w (C, K), dw_b (C,), pw_w (C_out, C_in), pw_b (C,)."""
    # Pure contiguous reshape (no HBM transpose); bf16 I/O to halve traffic.
    x_flat = x_tbc.reshape(N, C).astype(jnp.bfloat16)
    if N_PAD != N:
        x_flat = jnp.pad(x_flat, ((0, N_PAD - N), (0, 0)))

    gamma2 = gamma.reshape(1, C).astype(jnp.float32)
    beta2 = beta.reshape(1, C).astype(jnp.float32)
    dw_w_kc = jnp.transpose(dw_w, (1, 0)).astype(jnp.float32)    # (K, C)
    dw_b2 = dw_b.reshape(1, C).astype(jnp.float32)
    pw_w_t = jnp.transpose(pw_w, (1, 0))                         # (C_in, C_out)
    pw_w_t = pw_w_t.astype(jnp.bfloat16 if MXU_BF16 else jnp.float32)
    pw_b2 = pw_b.reshape(1, C).astype(jnp.float32)

    def wspec(shape):
        # Whole (small) weight resident in VMEM; constant block index.
        return pl.BlockSpec(shape, lambda i: (0, 0))

    in_specs = [
        # main row tile
        pl.BlockSpec((TM, C), lambda i: (i, 0)),
        # left halo: HB-block ending at row i*TM (clamped to block 0 at i==0)
        pl.BlockSpec((HB, C), lambda i: (jnp.maximum(i * R - 1, 0), 0)),
        # right halo: HB-block starting at row (i+1)*TM (clamped at last tile)
        pl.BlockSpec((HB, C), lambda i: (jnp.minimum((i + 1) * R, NHB - 1), 0)),
        wspec((1, C)), wspec((1, C)), wspec((K, C)), wspec((1, C)),
        wspec((C, C)), wspec((1, C)),
    ]
    out_spec = pl.BlockSpec((TM, C), lambda i: (i, 0))

    cost = pl.CostEstimate(
        flops=NBLK * (2 * TM * C * C + 2 * K * TM * C + 10 * (TM + 2 * HB) * C),
        transcendentals=NBLK * (TM + 2 * HB),
        bytes_accessed=(2 * (N_PAD + NBLK * 2 * HB) * C      # bf16 x (+halo reread)
                        + 2 * N_PAD * C                       # bf16 out
                        + 4 * (C * C + (K + 4) * C)),         # weights
    )

    out_flat = pl.pallas_call(
        conformer_conv_kernel,
        grid=(NBLK,),
        out_shape=jax.ShapeDtypeStruct((N_PAD, C), jnp.bfloat16),
        in_specs=in_specs,
        out_specs=out_spec,
        compiler_params=pltpu.CompilerParams(
            # Row tiles are independent (halo comes in explicitly), so the
            # grid axis is truly parallel -> both TCs on v7x.
            dimension_semantics=("parallel",),
        ),
        cost_estimate=cost,
    )(x_flat, x_flat, x_flat, gamma2, beta2, dw_w_kc, dw_b2, pw_w_t, pw_b2)

    return out_flat[:N].reshape(T, B, C)                        # reshape, no transpose


# ------------------------- plain-JAX reference ------------------------------
def reference(x, gamma, beta, dw_w, dw_b, pw_w, pw_b):
    # x: (T, B, C) — mirrors the PyTorch forward exactly (f32 throughout).
    mean = x.mean(-1, keepdims=True)
    var = ((x - mean) ** 2).mean(-1, keepdims=True)
    y = (x - mean) / jnp.sqrt(var + EPS) * gamma + beta          # LayerNorm
    y = jnp.transpose(y, (1, 2, 0))                              # (B, C, T)
    yp = jnp.pad(y, ((0, 0), (0, 0), (PAD, PAD)))
    dw = sum(yp[:, :, k:k + T] * dw_w[None, :, k:k + 1] for k in range(K))
    dw = dw + dw_b[None, :, None]
    act = jnp.maximum(dw, 0.0)                                   # ReLU
    pw = jnp.einsum('oc,bct->bot', pw_w, act) + pw_b[None, :, None]
    return jnp.transpose(pw, (2, 0, 1))                          # (T, B, C)


# --------------------------------- main -------------------------------------
if __name__ == "__main__":
    key = jax.random.PRNGKey(0)
    kx, kg, kb, kdw, kdb, kpw, kpb = jax.random.split(key, 7)

    x = jax.random.normal(kx, (T, B, C), dtype=jnp.float32)

    # Deterministic synthetic parameters (torch shapes, squeezed conv dims).
    gamma = 1.0 + 0.1 * jax.random.normal(kg, (C,), dtype=jnp.float32)
    beta = 0.1 * jax.random.normal(kb, (C,), dtype=jnp.float32)
    dw_w = 0.3 * jax.random.normal(kdw, (C, K), dtype=jnp.float32)   # (C, 1, K) squeezed
    dw_b = 0.1 * jax.random.normal(kdb, (C,), dtype=jnp.float32)
    pw_w = 0.2 * jax.random.normal(kpw, (C, C), dtype=jnp.float32)   # (C, C, 1) squeezed
    pw_b = 0.1 * jax.random.normal(kpb, (C,), dtype=jnp.float32)

    out = conformer_conv_block(x, gamma, beta, dw_w, dw_b, pw_w, pw_b)
    out = jax.block_until_ready(out)

    # Reference sees the same bf16-rounded input the kernel reads from HBM.
    x_q = x.astype(jnp.bfloat16).astype(jnp.float32)
    ref = reference(x_q, gamma, beta, dw_w, dw_b, pw_w, pw_b)

    np.testing.assert_allclose(np.asarray(out, dtype=np.float32),
                               np.asarray(ref),
                               rtol=2e-2, atol=2e-2)   # bf16 output rounding

    print("KERNEL_OK")
</pallas_src>

<mosaic_0001>
module attributes {stable_mosaic.version = 11 : i64} {
  func.func @conformer_conv_kernel(%arg0: i32, %arg1: memref<32x128xbf16, #tpu.memory_space<vmem>>, %arg2: memref<16x128xbf16, #tpu.memory_space<vmem>>, %arg3: memref<16x128xbf16, #tpu.memory_space<vmem>>, %arg4: memref<1x128xf32, #tpu.memory_space<vmem>>, %arg5: memref<1x128xf32, #tpu.memory_space<vmem>>, %arg6: memref<3x128xf32, #tpu.memory_space<vmem>>, %arg7: memref<1x128xf32, #tpu.memory_space<vmem>>, %arg8: memref<128x128xf32, #tpu.memory_space<vmem>>, %arg9: memref<1x128xf32, #tpu.memory_space<vmem>>, %arg10: memref<32x128xbf16, #tpu.memory_space<vmem>>) attributes {dimension_semantics = [#tpu.dimension_semantics<parallel>], iteration_bounds = array<i64: 4>, scalar_prefetch = 0 : i64, scratch_operands = 0 : i64, tpu.core_type = #tpu.core_type<tc>, window_params = [{transform_indices = @transform_0, window_bounds = array<i64: 32, 128>}, {transform_indices = @transform_1, window_bounds = array<i64: 16, 128>}, {transform_indices = @transform_2, window_bounds = array<i64: 16, 128>}, {pipeline_mode = #tpu.pipeline_mode<synchronous>, transform_indices = @transform_3, window_bounds = array<i64: 1, 128>}, {pipeline_mode = #tpu.pipeline_mode<synchronous>, transform_indices = @transform_4, window_bounds = array<i64: 1, 128>}, {pipeline_mode = #tpu.pipeline_mode<synchronous>, transform_indices = @transform_5, window_bounds = array<i64: 3, 128>}, {pipeline_mode = #tpu.pipeline_mode<synchronous>, transform_indices = @transform_6, window_bounds = array<i64: 1, 128>}, {pipeline_mode = #tpu.pipeline_mode<synchronous>, transform_indices = @transform_7, window_bounds = array<i64: 128, 128>}, {pipeline_mode = #tpu.pipeline_mode<synchronous>, transform_indices = @transform_8, window_bounds = array<i64: 1, 128>}, {transform_indices = @transform_9, window_bounds = array<i64: 32, 128>}]} {
    %c0 = arith.constant 0 : index
    %c0_0 = arith.constant 0 : index
    %0 = vector.load %arg2[%c0, %c0_0] : memref<16x128xbf16, #tpu.memory_space<vmem>>, vector<16x128xbf16>
    %c0_1 = arith.constant 0 : index
    %c0_2 = arith.constant 0 : index
    %1 = vector.load %arg1[%c0_1, %c0_2] : memref<32x128xbf16, #tpu.memory_space<vmem>>, vector<32x128xbf16>
    %c0_3 = arith.constant 0 : index
    %c0_4 = arith.constant 0 : index
    %2 = vector.load %arg3[%c0_3, %c0_4] : memref<16x128xbf16, #tpu.memory_space<vmem>>, vector<16x128xbf16>
    %3 = tpu.concatenate %0, %1, %2 in 0 : vector<16x128xbf16>, vector<32x128xbf16>, vector<16x128xbf16> -> vector<64x128xbf16>
    %4 = arith.extf %3 : vector<64x128xbf16> to vector<64x128xf32>
    %cst = arith.constant dense<0.000000e+00> : vector<64xf32>
    %5 = vector.multi_reduction <add>, %4, %cst [1] : vector<64x128xf32> to vector<64xf32>
    %6 = vector.shape_cast %5 : vector<64xf32> to vector<64x1xf32>
    %cst_5 = arith.constant 1.280000e+02 : f32
    %7 = vector.broadcast %cst_5 : f32 to vector<64x1xf32>
    %8 = arith.divf %6, %7 : vector<64x1xf32>
    %9 = vector.broadcast %8 : vector<64x1xf32> to vector<64x128xf32>
    %10 = arith.subf %4, %9 : vector<64x128xf32>
    %11 = arith.mulf %10, %10 : vector<64x128xf32>
    %cst_6 = arith.constant dense<0.000000e+00> : vector<64xf32>
    %12 = vector.multi_reduction <add>, %11, %cst_6 [1] : vector<64x128xf32> to vector<64xf32>
    %13 = vector.shape_cast %12 : vector<64xf32> to vector<64x1xf32>
    %cst_7 = arith.constant 1.280000e+02 : f32
    %14 = vector.broadcast %cst_7 : f32 to vector<64x1xf32>
    %15 = arith.divf %13, %14 : vector<64x1xf32>
    %16 = vector.broadcast %8 : vector<64x1xf32> to vector<64x128xf32>
    %17 = arith.subf %4, %16 : vector<64x128xf32>
    %cst_8 = arith.constant 9.99999974E-6 : f32
    %18 = vector.broadcast %cst_8 : f32 to vector<64x1xf32>
    %19 = arith.addf %15, %18 : vector<64x1xf32>
    %20 = math.rsqrt %19 : vector<64x1xf32>
    %21 = vector.broadcast %20 : vector<64x1xf32> to vector<64x128xf32>
    %22 = arith.mulf %17, %21 : vector<64x128xf32>
    %c0_9 = arith.constant 0 : index
    %c0_10 = arith.constant 0 : index
    %23 = vector.load %arg4[%c0_9, %c0_10] : memref<1x128xf32, #tpu.memory_space<vmem>>, vector<1x128xf32>
    %24 = vector.broadcast %23 : vector<1x128xf32> to vector<64x128xf32>
    %25 = arith.mulf %22, %24 : vector<64x128xf32>
    %c0_11 = arith.constant 0 : index
    %c0_12 = arith.constant 0 : index
    %26 = vector.load %arg5[%c0_11, %c0_12] : memref<1x128xf32, #tpu.memory_space<vmem>>, vector<1x128xf32>
    %27 = vector.broadcast %26 : vector<1x128xf32> to vector<64x128xf32>
    %28 = arith.addf %25, %27 : vector<64x128xf32>
    %29 = tpu.iota {dimensions = array<i32: 0>} : vector<64x1xi32>
    %c32_i32 = arith.constant 32 : i32
    %30 = arith.muli %arg0, %c32_i32 : i32
    %c16_i32 = arith.constant 16 : i32
    %31 = arith.subi %30, %c16_i32 : i32
    %32 = vector.broadcast %31 : i32 to vector<64x1xi32>
    %33 = arith.addi %29, %32 : vector<64x1xi32>
    %c0_i32 = arith.constant 0 : i32
    %34 = vector.broadcast %c0_i32 : i32 to vector<64x1xi32>
    %35 = arith.cmpi sge, %33, %34 : vector<64x1xi32>
    %c100_i32 = arith.constant 100 : i32
    %36 = vector.broadcast %c100_i32 : i32 to vector<64x1xi32>
    %37 = arith.cmpi slt, %33, %36 : vector<64x1xi32>
    %38 = arith.andi %35, %37 : vector<64x1xi1>
    %cst_13 = arith.constant 0.000000e+00 : f32
    %39 = vector.shape_cast %38 : vector<64x1xi1> to vector<64x1xi1>
    %40 = vector.broadcast %39 : vector<64x1xi1> to vector<64x128xi1>
    %41 = vector.broadcast %cst_13 : f32 to vector<64x128xf32>
    %42 = arith.select %40, %28, %41 : vector<64x128xi1>, vector<64x128xf32>
    %c0_14 = arith.constant 0 : index
    %c0_15 = arith.constant 0 : index
    %43 = vector.load %arg6[%c0_14, %c0_15] : memref<3x128xf32, #tpu.memory_space<vmem>>, vector<3x128xf32>
    %44 = vector.extract_strided_slice %42 {offsets = [16, 0], sizes = [32, 128], strides = [1, 1]} : vector<64x128xf32> to vector<32x128xf32>
    %45 = vector.extract_strided_slice %43 {offsets = [1, 0], sizes = [1, 128], strides = [1, 1]} : vector<3x128xf32> to vector<1x128xf32>
    %46 = vector.broadcast %45 : vector<1x128xf32> to vector<32x128xf32>
    %47 = arith.mulf %44, %46 : vector<32x128xf32>
    %48 = vector.extract_strided_slice %42 {offsets = [12, 0], sizes = [32, 128], strides = [1, 1]} : vector<64x128xf32> to vector<32x128xf32>
    %49 = vector.extract_strided_slice %43 {offsets = [0, 0], sizes = [1, 128], strides = [1, 1]} : vector<3x128xf32> to vector<1x128xf32>
    %50 = vector.broadcast %49 : vector<1x128xf32> to vector<32x128xf32>
    %51 = arith.mulf %48, %50 : vector<32x128xf32>
    %52 = arith.addf %47, %51 : vector<32x128xf32>
    %53 = vector.extract_strided_slice %42 {offsets = [20, 0], sizes = [32, 128], strides = [1, 1]} : vector<64x128xf32> to vector<32x128xf32>
    %54 = vector.extract_strided_slice %43 {offsets = [2, 0], sizes = [1, 128], strides = [1, 1]} : vector<3x128xf32> to vector<1x128xf32>
    %55 = vector.broadcast %54 : vector<1x128xf32> to vector<32x128xf32>
    %56 = arith.mulf %53, %55 : vector<32x128xf32>
    %57 = arith.addf %52, %56 : vector<32x128xf32>
    %c0_16 = arith.constant 0 : index
    %c0_17 = arith.constant 0 : index
    %58 = vector.load %arg7[%c0_16, %c0_17] : memref<1x128xf32, #tpu.memory_space<vmem>>, vector<1x128xf32>
    %59 = vector.broadcast %58 : vector<1x128xf32> to vector<32x128xf32>
    %60 = arith.addf %57, %59 : vector<32x128xf32>
    %cst_18 = arith.constant 0.000000e+00 : f32
    %61 = vector.broadcast %cst_18 : f32 to vector<32x128xf32>
    %62 = arith.maximumf %60, %61 : vector<32x128xf32>
    %c0_19 = arith.constant 0 : index
    %c0_20 = arith.constant 0 : index
    %63 = vector.load %arg8[%c0_19, %c0_20] : memref<128x128xf32, #tpu.memory_space<vmem>>, vector<128x128xf32>
    %cst_21 = arith.constant dense<0.000000e+00> : vector<32x128xf32>
    %64 = tpu.matmul %62, %63, %cst_21 {dimension_numbers = #tpu.dot_dimension_numbers<[1], [0], [0], [1], [0, 0, 1, 1], [], []>} : vector<32x128xf32>, vector<128x128xf32>, vector<32x128xf32> -> vector<32x128xf32>
    %c0_22 = arith.constant 0 : index
    %c0_23 = arith.constant 0 : index
    %65 = vector.load %arg9[%c0_22, %c0_23] : memref<1x128xf32, #tpu.memory_space<vmem>>, vector<1x128xf32>
    %66 = vector.broadcast %65 : vector<1x128xf32> to vector<32x128xf32>
    %67 = arith.addf %64, %66 : vector<32x128xf32>
    %68 = arith.truncf %67 : vector<32x128xf32> to vector<32x128xbf16>
    %c0_24 = arith.constant 0 : index
    %c0_25 = arith.constant 0 : index
    %69 = vector.load %arg10[%c0_24, %c0_25] : memref<32x128xbf16, #tpu.memory_space<vmem>>, vector<32x128xbf16>
    tpu.vector_store %arg10[%c0_24, %c0_25], %68 {strides = array<i32>} : memref<32x128xbf16, #tpu.memory_space<vmem>>, vector<32x128xbf16>,
    return
  }
  func.func @transform_0(%arg0: i32) -> (i32, i32) {
    %c0_i32 = arith.constant 0 : i32
    %c0_i32_0 = arith.constant 0 : i32
    return %arg0, %c0_i32 : i32, i32
  }
  func.func @transform_1(%arg0: i32) -> (i32, i32) {
    %c2_i32 = arith.constant 2 : i32
    %0 = arith.muli %arg0, %c2_i32 : i32
    %c1_i32 = arith.constant 1 : i32
    %1 = arith.subi %0, %c1_i32 : i32
    %c0_i32 = arith.constant 0 : i32
    %2 = arith.maxsi %1, %c0_i32 : i32
    %c0_i32_0 = arith.constant 0 : i32
    %c0_i32_1 = arith.constant 0 : i32
    return %2, %c0_i32_0 : i32, i32
  }
  func.func @transform_2(%arg0: i32) -> (i32, i32) {
    %c1_i32 = arith.constant 1 : i32
    %0 = arith.addi %arg0, %c1_i32 : i32
    %c2_i32 = arith.constant 2 : i32
    %1 = arith.muli %0, %c2_i32 : i32
    %c7_i32 = arith.constant 7 : i32
    %2 = arith.minsi %1, %c7_i32 : i32
    %c0_i32 = arith.constant 0 : i32
    %c0_i32_0 = arith.constant 0 : i32
    return %2, %c0_i32 : i32, i32
  }
  func.func @transform_3(%arg0: i32) -> (i32, i32) {
    %c0_i32 = arith.constant 0 : i32
    %c0_i32_0 = arith.constant 0 : i32
    %c0_i32_1 = arith.constant 0 : i32
    return %c0_i32, %c0_i32_0 : i32, i32
  }
  func.func @transform_4(%arg0: i32) -> (i32, i32) {
    %c0_i32 = arith.constant 0 : i32
    %c0_i32_0 = arith.constant 0 : i32
    %c0_i32_1 = arith.constant 0 : i32
    return %c0_i32, %c0_i32_0 : i32, i32
  }
  func.func @transform_5(%arg0: i32) -> (i32, i32) {
    %c0_i32 = arith.constant 0 : i32
    %c0_i32_0 = arith.constant 0 : i32
    %c0_i32_1 = arith.constant 0 : i32
    return %c0_i32, %c0_i32_0 : i32, i32
  }
  func.func @transform_6(%arg0: i32) -> (i32, i32) {
    %c0_i32 = arith.constant 0 : i32
    %c0_i32_0 = arith.constant 0 : i32
    %c0_i32_1 = arith.constant 0 : i32
    return %c0_i32, %c0_i32_0 : i32, i32
  }
  func.func @transform_7(%arg0: i32) -> (i32, i32) {
    %c0_i32 = arith.constant 0 : i32
    %c0_i32_0 = arith.constant 0 : i32
    %c0_i32_1 = arith.constant 0 : i32
    return %c0_i32, %c0_i32_0 : i32, i32
  }
  func.func @transform_8(%arg0: i32) -> (i32, i32) {
    %c0_i32 = arith.constant 0 : i32
    %c0_i32_0 = arith.constant 0 : i32
    %c0_i32_1 = arith.constant 0 : i32
    return %c0_i32, %c0_i32_0 : i32, i32
  }
  func.func @transform_9(%arg0: i32) -> (i32, i32) {
    %c0_i32 = arith.constant 0 : i32
    %c0_i32_0 = arith.constant 0 : i32
    return %arg0, %c0_i32 : i32, i32
  }
}

</mosaic_0001>

<llo_original>
// kernel: tpu_custom_call.1
$region0: #{tpu_custom_call.1}
  #allocation0 [shape = 'u32[]', space=smem, size = 0x4, offset = 0x4, fixed_abs, tag = 'smem constant byte address 0x4 - core index']
  #allocation1 [shape = 'u32[144,128]{1,0:T(1,128)}', space=vmem, size = 0x12000, scoped, tag = 'internal scratch']
  %s0 = inlined_call_operand.hbm [shape: bf16[128,128], index: 0, kind: input, shape index: {}]
  %s1 = inlined_call_operand.hbm [shape: bf16[128,128], index: 1, kind: input, shape index: {}]
  %s2 = inlined_call_operand.hbm [shape: bf16[128,128], index: 2, kind: input, shape index: {}]
  %s3 = inlined_call_operand.vmem [shape: f32[1,128], index: 3, kind: input, shape index: {}]
  %s4 = inlined_call_operand.vmem [shape: f32[1,128], index: 4, kind: input, shape index: {}]
  %s5 = inlined_call_operand.vmem [shape: f32[3,128], index: 5, kind: input, shape index: {}]
  %s6 = inlined_call_operand.vmem [shape: f32[1,128], index: 6, kind: input, shape index: {}]
  %s7 = inlined_call_operand.hbm [shape: f32[128,128], index: 7, kind: input, shape index: {}]
  %s8 = inlined_call_operand.vmem [shape: f32[1,128], index: 8, kind: input, shape index: {}]
  %s9 = inlined_call_operand.hbm [shape: bf16[128,128], index: 9, kind: output, shape index: {}]
  %s10 = sld [smem:[#allocation0]]
  $region85: #{tpu_custom_call.1} parent=0
    _
  %s12 = ssub.s32 1, %s10
  %s13 = scalar_select 0, %s12, %s10
  $region1: #{tpu_custom_call.1} parent=0
    #allocation2 [shape = 'u8[16384]{0}', space=vmem, size = 0x4000, scoped, tag = 'input window, operand 0']
    #allocation3 [shape = 's32[2]{0}', space=sflag, size = 0x8, scoped, tag = 'scoped memory for tpu_custom_call.1']
    #allocation4 [shape = 's32[2]{0}', space=sflag, size = 0x8, scoped, tag = 'scoped memory for tpu_custom_call.1']
    #allocation5 [shape = 'u8[8192]{0}', space=vmem, size = 0x2000, scoped, tag = 'input window, operand 1']
    #allocation6 [shape = 's32[2]{0}', space=sflag, size = 0x8, scoped, tag = 'scoped memory for tpu_custom_call.1']
    #allocation7 [shape = 'u8[8192]{0}', space=vmem, size = 0x2000, scoped, tag = 'input window, operand 2']
    #allocation8 [shape = 'u8[65536]{0}', space=vmem, size = 0x10000, scoped, tag = 'input window, operand 7, single buffered']
    #allocation9 [shape = 's32[1]{0}', space=sflag, size = 0x4, scoped, tag = 'scoped memory for tpu_custom_call.1']
    #allocation10 [shape = 'u8[16384]{0}', space=vmem, size = 0x4000, scoped, tag = 'output window, operand 0']
    %14 = vsyncpa [#allocation3], 0
    %s15 = scalar_lea.sflag [#allocation3], 1
    %16 = vsyncpa %s15, 0
    %17 = vsyncpa [#allocation6], 0
    %s18 = scalar_lea.sflag [#allocation6], 1
    %19 = vsyncpa %s18, 0
    %20 = vsyncpa [#allocation9], 0
    %21 = vsyncpa [#allocation4], 0
    %s22 = scalar_lea.sflag [#allocation4], 1
    %23 = vsyncpa %s22, 0
    loop: start=0, step=1, limit=6
    $region2: #{tpu_custom_call.1} parent=1 // loop_pre_header
      _
    $region3: #{tpu_custom_call.1} parent=1 // loop_header
      %s25 = sphi 0, %s29
      %p26 = scmp.ge.s32.totalorder %s25, 6
      %s35 = sphi 0, %s37
      %s38 = sphi 0, %s35
      %s39 = sphi 0, %s38
      %s55 = sphi 0, %s39
      %s69 = sphi 0, %s71
      %s72 = sphi 0, %s69
      %s73 = sphi 0, %s72
      %s89 = sphi 0, %s73
      %s103 = sphi 0, %s105
      %s106 = sphi 0, %s103
      %s107 = sphi 0, %s106
      %s123 = sphi 0, %s107
      %s127 = sphi 0, %s127
      %s129 = sphi 0, %s127
      %s130 = sphi 0, %s129
      %s144 = sphi 0, %s130
      %s148 = sphi 0, %s148
      %s150 = sphi 0, %s148
      %s151 = sphi 0, %s150
      %s165 = sphi 0, %s151
      %s169 = sphi 0, %s169
      %s171 = sphi 0, %s169
      %s172 = sphi 0, %s171
      %s186 = sphi 0, %s172
      %s190 = sphi 0, %s190
      %s192 = sphi 0, %s190
      %s193 = sphi 0, %s192
      %s207 = sphi 0, %s193
      %s211 = sphi 0, %s211
      %s213 = sphi 0, %s211
      %s214 = sphi 0, %s213
      %s228 = sphi 0, %s214
      %s232 = sphi 0, %s232
      %s234 = sphi 0, %s232
      %s235 = sphi 0, %s234
      %s249 = sphi 0, %s235
      %s255 = sphi 0, %s257
      %s258 = sphi 0, %s255
      %s259 = sphi 0, %s258
      %s275 = sphi 0, %s259
    $region4: #{tpu_custom_call.1} parent=1 // loop_header_branch
      %28 = sbr.rel (%p26) target = $region8
    $region5: #{tpu_custom_call.1} parent=1 // loop_body
      %s30 = ssub.s32 %s25, 1
      %s31 = ssub.s32 %s25, 2
      %s32 = sadd.s32 %s25, 1
      %s33 = ssub.s32 %s25, %s32
      %p34 = scmp.eq.s32.totalorder %s33, 0
      %s36 = sadd.s32 %s35, 1
      %s37 = scalar_select %p34, %s35, %s36
      %p40 = pneg %p34
      %p41 = scmp.eq.s32.totalorder %s25, 3
      %p42 = por %p40, %p41
      %p43 = scmp.ne.s32.totalorder %s35, %s38
      %p44 = scmp.eq.s32.totalorder %s25, 0
      %p45 = por %p43, %p44
      %p46 = scmp.ne.s32.totalorder %s35, %s38
      %p47 = scmp.eq.s32.totalorder %s30, 3
      %p48 = por %p46, %p47
      %p49 = scmp.ne.s32.totalorder %s38, %s39
      %p50 = scmp.eq.s32.totalorder %s30, 0
      %p51 = por %p49, %p50
      %p52 = scmp.ne.s32.totalorder %s38, %s39
      %p53 = scmp.eq.s32.totalorder %s31, 3
      %p54 = por %p52, %p53
      %p56 = scmp.ne.s32.totalorder %s39, %s55
      %p57 = scmp.eq.s32.totalorder %s31, 0
      %p58 = por %p56, %p57
      %s59 = smul.u32 %s25, 2
      %s60 = ssub.s32 %s59, 1
      %p61 = scmp.gt.s32.totalorder %s60, 0
      %s62 = scalar_select %p61, %s60, 0
      %s63 = smul.u32 %s32, 2
      %s64 = ssub.s32 %s63, 1
      %p65 = scmp.gt.s32.totalorder %s64, 0
      %s66 = scalar_select %p65, %s64, 0
      %s67 = ssub.s32 %s62, %s66
      %p68 = scmp.eq.s32.totalorder %s67, 0
      %s70 = sadd.s32 %s69, 1
      %s71 = scalar_select %p68, %s69, %s70
      %p74 = pneg %p68
      %p75 = scmp.eq.s32.totalorder %s25, 3
      %p76 = por %p74, %p75
      %p77 = scmp.ne.s32.totalorder %s69, %s72
      %p78 = scmp.eq.s32.totalorder %s25, 0
      %p79 = por %p77, %p78
      %p80 = scmp.ne.s32.totalorder %s69, %s72
      %p81 = scmp.eq.s32.totalorder %s30, 3
      %p82 = por %p80, %p81
      %p83 = scmp.ne.s32.totalorder %s72, %s73
      %p84 = scmp.eq.s32.totalorder %s30, 0
      %p85 = por %p83, %p84
      %p86 = scmp.ne.s32.totalorder %s72, %s73
      %p87 = scmp.eq.s32.totalorder %s31, 3
      %p88 = por %p86, %p87
      %p90 = scmp.ne.s32.totalorder %s73, %s89
      %p91 = scmp.eq.s32.totalorder %s31, 0
      %p92 = por %p90, %p91
      %s93 = sadd.s32 %s25, 1
      %s94 = smul.u32 %s93, 2
      %p95 = scmp.lt.s32.totalorder %s94, 7
      %s96 = scalar_select %p95, %s94, 7
      %s97 = sadd.s32 %s32, 1
      %s98 = smul.u32 %s97, 2
      %p99 = scmp.lt.s32.totalorder %s98, 7
      %s100 = scalar_select %p99, %s98, 7
      %s101 = ssub.s32 %s96, %s100
      %p102 = scmp.eq.s32.totalorder %s101, 0
      %s104 = sadd.s32 %s103, 1
      %s105 = scalar_select %p102, %s103, %s104
      %p108 = pneg %p102
      %p109 = scmp.eq.s32.totalorder %s25, 3
      %p110 = por %p108, %p109
      %p111 = scmp.ne.s32.totalorder %s103, %s106
      %p112 = scmp.eq.s32.totalorder %s25, 0
      %p113 = por %p111, %p112
      %p114 = scmp.ne.s32.totalorder %s103, %s106
      %p115 = scmp.eq.s32.totalorder %s30, 3
      %p116 = por %p114, %p115
      %p117 = scmp.ne.s32.totalorder %s106, %s107
      %p118 = scmp.eq.s32.totalorder %s30, 0
      %p119 = por %p117, %p118
      %p120 = scmp.ne.s32.totalorder %s106, %s107
      %p121 = scmp.eq.s32.totalorder %s31, 3
      %p122 = por %p120, %p121
      %p124 = scmp.ne.s32.totalorder %s107, %s123
      %p125 = scmp.eq.s32.totalorder %s31, 0
      %p126 = por %p124, %p125
      %s128 = sadd.s32 %s127, 1
      %p131 = scmp.eq.s32.totalorder %s25, 3
      %p132 = scmp.ne.s32.totalorder %s127, %s129
      %p133 = scmp.eq.s32.totalorder %s25, 0
      %p134 = por %p132, %p133
      %p135 = scmp.ne.s32.totalorder %s127, %s129
      %p136 = scmp.eq.s32.totalorder %s30, 3
      %p137 = por %p135, %p136
      %p138 = scmp.ne.s32.totalorder %s129, %s130
      %p139 = scmp.eq.s32.totalorder %s30, 0
      %p140 = por %p138, %p139
      %p141 = scmp.ne.s32.totalorder %s129, %s130
      %p142 = scmp.eq.s32.totalorder %s31, 3
      %p143 = por %p141, %p142
      %p145 = scmp.ne.s32.totalorder %s130, %s144
      %p146 = scmp.eq.s32.totalorder %s31, 0
      %p147 = por %p145, %p146
      %s149 = sadd.s32 %s148, 1
      %p152 = scmp.eq.s32.totalorder %s25, 3
      %p153 = scmp.ne.s32.totalorder %s148, %s150
      %p154 = scmp.eq.s32.totalorder %s25, 0
      %p155 = por %p153, %p154
      %p156 = scmp.ne.s32.totalorder %s148, %s150
      %p157 = scmp.eq.s32.totalorder %s30, 3
      %p158 = por %p156, %p157
      %p159 = scmp.ne.s32.totalorder %s150, %s151
      %p160 = scmp.eq.s32.totalorder %s30, 0
      %p161 = por %p159, %p160
      %p162 = scmp.ne.s32.totalorder %s150, %s151
      %p163 = scmp.eq.s32.totalorder %s31, 3
      %p164 = por %p162, %p163
      %p166 = scmp.ne.s32.totalorder %s151, %s165
      %p167 = scmp.eq.s32.totalorder %s31, 0
      %p168 = por %p166, %p167
      %s170 = sadd.s32 %s169, 1
      %p173 = scmp.eq.s32.totalorder %s25, 3
      %p174 = scmp.ne.s32.totalorder %s169, %s171
      %p175 = scmp.eq.s32.totalorder %s25, 0
      %p176 = por %p174, %p175
      %p177 = scmp.ne.s32.totalorder %s169, %s171
      %p178 = scmp.eq.s32.totalorder %s30, 3
      %p179 = por %p177, %p178
      %p180 = scmp.ne.s32.totalorder %s171, %s172
      %p181 = scmp.eq.s32.totalorder %s30, 0
      %p182 = por %p180, %p181
      %p183 = scmp.ne.s32.totalorder %s171, %s172
      %p184 = scmp.eq.s32.totalorder %s31, 3
      %p185 = por %p183, %p184
      %p187 = scmp.ne.s32.totalorder %s172, %s186
      %p188 = scmp.eq.s32.totalorder %s31, 0
      %p189 = por %p187, %p188
      %s191 = sadd.s32 %s190, 1
      %p194 = scmp.eq.s32.totalorder %s25, 3
      %p195 = scmp.ne.s32.totalorder %s190, %s192
      %p196 = scmp.eq.s32.totalorder %s25, 0
      %p197 = por %p195, %p196
      %p198 = scmp.ne.s32.totalorder %s190, %s192
      %p199 = scmp.eq.s32.totalorder %s30, 3
      %p200 = por %p198, %p199
      %p201 = scmp.ne.s32.totalorder %s192, %s193
      %p202 = scmp.eq.s32.totalorder %s30, 0
      %p203 = por %p201, %p202
      %p204 = scmp.ne.s32.totalorder %s192, %s193
      %p205 = scmp.eq.s32.totalorder %s31, 3
      %p206 = por %p204, %p205
      %p208 = scmp.ne.s32.totalorder %s193, %s207
      %p209 = scmp.eq.s32.totalorder %s31, 0
      %p210 = por %p208, %p209
      %s212 = sadd.s32 %s211, 1
      %p215 = scmp.eq.s32.totalorder %s25, 3
      %p216 = scmp.ne.s32.totalorder %s211, %s213
      %p217 = scmp.eq.s32.totalorder %s25, 0
      %p218 = por %p216, %p217
      %p219 = scmp.ne.s32.totalorder %s211, %s213
      %p220 = scmp.eq.s32.totalorder %s30, 3
      %p221 = por %p219, %p220
      %p222 = scmp.ne.s32.totalorder %s213, %s214
      %p223 = scmp.eq.s32.totalorder %s30, 0
      %p224 = por %p222, %p223
      %p225 = scmp.ne.s32.totalorder %s213, %s214
      %p226 = scmp.eq.s32.totalorder %s31, 3
      %p227 = por %p225, %p226
      %p229 = scmp.ne.s32.totalorder %s214, %s228
      %p230 = scmp.eq.s32.totalorder %s31, 0
      %p231 = por %p229, %p230
      %s233 = sadd.s32 %s232, 1
      %p236 = scmp.eq.s32.totalorder %s25, 3
      %p237 = scmp.ne.s32.totalorder %s232, %s234
      %p238 = scmp.eq.s32.totalorder %s25, 0
      %p239 = por %p237, %p238
      %p240 = scmp.ne.s32.totalorder %s232, %s234
      %p241 = scmp.eq.s32.totalorder %s30, 3
      %p242 = por %p240, %p241
      %p243 = scmp.ne.s32.totalorder %s234, %s235
      %p244 = scmp.eq.s32.totalorder %s30, 0
      %p245 = por %p243, %p244
      %p246 = scmp.ne.s32.totalorder %s234, %s235
      %p247 = scmp.eq.s32.totalorder %s31, 3
      %p248 = por %p246, %p247
      %p250 = scmp.ne.s32.totalorder %s235, %s249
      %p251 = scmp.eq.s32.totalorder %s31, 0
      %p252 = por %p250, %p251
      %s253 = ssub.s32 %s25, %s32
      %p254 = scmp.eq.s32.totalorder %s253, 0
      %s256 = sadd.s32 %s255, 1
      %s257 = scalar_select %p254, %s255, %s256
      %p260 = pneg %p254
      %p261 = scmp.eq.s32.totalorder %s25, 3
      %p262 = por %p260, %p261
      %p263 = scmp.ne.s32.totalorder %s255, %s258
      %p264 = scmp.eq.s32.totalorder %s25, 0
      %p265 = por %p263, %p264
      %p266 = scmp.ne.s32.totalorder %s255, %s258
      %p267 = scmp.eq.s32.totalorder %s30, 3
      %p268 = por %p266, %p267
      %p269 = scmp.ne.s32.totalorder %s258, %s259
      %p270 = scmp.eq.s32.totalorder %s30, 0
      %p271 = por %p269, %p270
      %p272 = scmp.ne.s32.totalorder %s258, %s259
      %p273 = scmp.eq.s32.totalorder %s31, 3
      %p274 = por %p272, %p273
      %p276 = scmp.ne.s32.totalorder %s259, %s275
      %p277 = scmp.eq.s32.totalorder %s31, 0
      %p278 = por %p276, %p277
      %p279 = scmp.le.s32.totalorder 1, %s25
      %p280 = scmp.lt.s32.totalorder %s25, 5
      %p281 = pnand %p279, %p280
      %p282 = pneg %p281
      // Predicated region
      $region9: #{tpu_custom_call.1} parent=5 // pred_check
        _
      $region10: #{tpu_custom_call.1} parent=5 // pred_check_branch
        %284 = sbr.rel (%p281) target = $region12
      $region11: #{tpu_custom_call.1} parent=5 // pred_region
        %s285 = ssub.s32 %s25, 1
        // Predicated region
        $region13: #{tpu_custom_call.1} parent=11 // pred_check
          %p286 = pneg %p140
        $region14: #{tpu_custom_call.1} parent=11 // pred_check_branch
          %288 = sbr.rel (%p286) target = $region16
        $region15: #{tpu_custom_call.1} parent=11 // pred_region
          _
        $region16: #{tpu_custom_call.1} parent=11 // pred_fallthru
          _
        // Predicated region
        $region17: #{tpu_custom_call.1} parent=11 // pred_check
          %p289 = pneg %p161
        $region18: #{tpu_custom_call.1} parent=11 // pred_check_branch
          %291 = sbr.rel (%p289) target = $region20
        $region19: #{tpu_custom_call.1} parent=11 // pred_region
          _
        $region20: #{tpu_custom_call.1} parent=11 // pred_fallthru
          _
        // Predicated region
        $region21: #{tpu_custom_call.1} parent=11 // pred_check
          %p292 = pneg %p182
        $region22: #{tpu_custom_call.1} parent=11 // pred_check_branch
          %294 = sbr.rel (%p292) target = $region24
        $region23: #{tpu_custom_call.1} parent=11 // pred_region
          _
        $region24: #{tpu_custom_call.1} parent=11 // pred_fallthru
          _
        // Predicated region
        $region25: #{tpu_custom_call.1} parent=11 // pred_check
          %p295 = pneg %p203
        $region26: #{tpu_custom_call.1} parent=11 // pred_check_branch
          %297 = sbr.rel (%p295) target = $region28
        $region27: #{tpu_custom_call.1} parent=11 // pred_region
          _
        $region28: #{tpu_custom_call.1} parent=11 // pred_fallthru
          _
        // Predicated region
        $region29: #{tpu_custom_call.1} parent=11 // pred_check
          %p298 = pneg %p224
        $region30: #{tpu_custom_call.1} parent=11 // pred_check_branch
          %300 = sbr.rel (%p298) target = $region32
        $region31: #{tpu_custom_call.1} parent=11 // pred_region
          %s302 = ssub.s32 2048, 2048
          %303 = vsyncadd [#allocation9], %s302
          %s304 = sshll.u32 [#allocation8], 4
          %s305 = int_to_ptr.vmem [resolvable:$true] %s304
          %310 = dma.hbm_to_vmem [thread:$0]  %s7, 2048, %s305, [#allocation9], 128, 128, 8
        $region32: #{tpu_custom_call.1} parent=11 // pred_fallthru
          _
        // Predicated region
        $region33: #{tpu_custom_call.1} parent=11 // pred_check
          %p311 = pneg %p245
        $region34: #{tpu_custom_call.1} parent=11 // pred_check_branch
          %313 = sbr.rel (%p311) target = $region36
        $region35: #{tpu_custom_call.1} parent=11 // pred_region
          _
        $region36: #{tpu_custom_call.1} parent=11 // pred_fallthru
          _
      $region12: #{tpu_custom_call.1} parent=5 // pred_fallthru
        _
      %p314 = scmp.lt.s32.totalorder %s25, 4
      // Predicated region
      $region37: #{tpu_custom_call.1} parent=5 // pred_check
        %p315 = pneg %p314
      $region38: #{tpu_custom_call.1} parent=5 // pred_check_branch
        %317 = sbr.rel (%p315) target = $region40
      $region39: #{tpu_custom_call.1} parent=5 // pred_region
        // Predicated region
        $region41: #{tpu_custom_call.1} parent=39 // pred_check
          %p318 = pneg %p45
        $region42: #{tpu_custom_call.1} parent=39 // pred_check_branch
          %320 = sbr.rel (%p318) target = $region44
        $region43: #{tpu_custom_call.1} parent=39 // pred_region
          %s321 = sand.u32 %s35, 1
          %s322 = scalar_lea.sflag [#allocation3], %s321
          %s323 = sand.u32 %s35, 1
          %s324 = smul.addr %s323, 16
          %s325 = scalar_lea.vmem [#allocation2], %s324
          %s326 = smul.u32 4, %s25
          %s328 = ssub.s32 256, 256
          %329 = vsyncadd %s322, %s328
          %s330 = smul.addr %s326, 64
          %s331 = scalar_lea.hbm %s0, %s330
          %s332 = sshll.u32 %s325, 4
          %s333 = int_to_ptr.vmem [resolvable:$true] %s332
          %338 = dma.hbm_to_vmem [thread:$0]  %s331, 256, %s333, %s322, 64, 64, 4
        $region44: #{tpu_custom_call.1} parent=39 // pred_fallthru
          _
        // Predicated region
        $region45: #{tpu_custom_call.1} parent=39 // pred_check
          %p339 = pneg %p79
        $region46: #{tpu_custom_call.1} parent=39 // pred_check_branch
          %341 = sbr.rel (%p339) target = $region48
        $region47: #{tpu_custom_call.1} parent=39 // pred_region
          %s342 = sand.u32 %s25, 1
          %s343 = scalar_lea.sflag [#allocation6], %s342
          %s344 = sand.u32 %s69, 1
          %s345 = smul.addr %s344, 8
          %s346 = scalar_lea.vmem [#allocation5], %s345
          %s347 = smul.u32 %s25, 2
          %s348 = ssub.s32 %s347, 1
          %p349 = scmp.gt.s32.totalorder %s348, 0
          %s350 = scalar_select %p349, %s348, 0
          %s351 = smul.u32 2, %s350
          %s353 = ssub.s32 128, 128
          %354 = vsyncadd %s343, %s353
          %s355 = smul.addr %s351, 64
          %s356 = scalar_lea.hbm %s1, %s355
          %s357 = sshll.u32 %s346, 4
          %s358 = int_to_ptr.vmem [resolvable:$true] %s357
          %363 = dma.hbm_to_vmem [thread:$0]  %s356, 128, %s358, %s343, 64, 64, 4
        $region48: #{tpu_custom_call.1} parent=39 // pred_fallthru
          _
        // Predicated region
        $region49: #{tpu_custom_call.1} parent=39 // pred_check
          %p364 = pneg %p113
        $region50: #{tpu_custom_call.1} parent=39 // pred_check_branch
          %366 = sbr.rel (%p364) target = $region52
        $region51: #{tpu_custom_call.1} parent=39 // pred_region
          %s367 = sand.u32 %s25, 1
          %s368 = scalar_lea.sflag [#allocation6], %s367
          %s369 = sand.u32 %s103, 1
          %s370 = smul.addr %s369, 8
          %s371 = scalar_lea.vmem [#allocation7], %s370
          %s372 = sadd.s32 %s25, 1
          %s373 = smul.u32 %s372, 2
          %p374 = scmp.lt.s32.totalorder %s373, 7
          %s375 = scalar_select %p374, %s373, 7
          %s376 = smul.u32 2, %s375
          %s378 = ssub.s32 128, 128
          %379 = vsyncadd %s368, %s378
          %s380 = smul.addr %s376, 64
          %s381 = scalar_lea.hbm %s2, %s380
          %s382 = sshll.u32 %s371, 4
          %s383 = int_to_ptr.vmem [resolvable:$true] %s382
          %388 = dma.hbm_to_vmem [thread:$0]  %s381, 128, %s383, %s368, 64, 64, 4
        $region52: #{tpu_custom_call.1} parent=39 // pred_fallthru
          _
      $region40: #{tpu_custom_call.1} parent=5 // pred_fallthru
        _
      %p389 = scmp.le.s32.totalorder 1, %s25
      %p390 = scmp.lt.s32.totalorder %s25, 5
      %p391 = pnand %p389, %p390
      %p392 = pneg %p391
      // Predicated region
      $region53: #{tpu_custom_call.1} parent=5 // pred_check
        _
      $region54: #{tpu_custom_call.1} parent=5 // pred_check_branch
        %394 = sbr.rel (%p391) target = $region56
      $region55: #{tpu_custom_call.1} parent=5 // pred_region
        %s395 = ssub.s32 %s25, 1
        %s396 = sand.u32 %s38, 1
        %s397 = scalar_lea.sflag [#allocation3], %s396
        %s398 = sand.u32 %s38, 1
        %s399 = smul.addr %s398, 16
        %s400 = scalar_lea.vmem [#allocation2], %s399
        // Predicated region
        $region57: #{tpu_custom_call.1} parent=55 // pred_check
          %p401 = pneg %p51
        $region58: #{tpu_custom_call.1} parent=55 // pred_check_branch
          %403 = sbr.rel (%p401) target = $region60
        $region59: #{tpu_custom_call.1} parent=55 // pred_region
          %404 = dma.done %s397, 256
        $region60: #{tpu_custom_call.1} parent=55 // pred_fallthru
          _
        %s405 = sand.u32 %s30, 1
        %s406 = scalar_lea.sflag [#allocation6], %s405
        %s407 = sand.u32 %s72, 1
        %s408 = smul.addr %s407, 8
        %s409 = scalar_lea.vmem [#allocation5], %s408
        // Predicated region
        $region61: #{tpu_custom_call.1} parent=55 // pred_check
          %p410 = pneg %p85
        $region62: #{tpu_custom_call.1} parent=55 // pred_check_branch
          %412 = sbr.rel (%p410) target = $region64
        $region63: #{tpu_custom_call.1} parent=55 // pred_region
          %413 = dma.done %s406, 128
        $region64: #{tpu_custom_call.1} parent=55 // pred_fallthru
          _
        %s414 = sand.u32 %s30, 1
        %s415 = scalar_lea.sflag [#allocation6], %s414
        %s416 = sand.u32 %s106, 1
        %s417 = smul.addr %s416, 8
        %s418 = scalar_lea.vmem [#allocation7], %s417
        // Predicated region
        $region65: #{tpu_custom_call.1} parent=55 // pred_check
          %p419 = pneg %p119
        $region66: #{tpu_custom_call.1} parent=55 // pred_check_branch
          %421 = sbr.rel (%p419) target = $region68
        $region67: #{tpu_custom_call.1} parent=55 // pred_region
          %422 = dma.done %s415, 128
        $region68: #{tpu_custom_call.1} parent=55 // pred_fallthru
          _
        // Predicated region
        $region69: #{tpu_custom_call.1} parent=55 // pred_check
          %p423 = pneg %p224
        $region70: #{tpu_custom_call.1} parent=55 // pred_check_branch
          %425 = sbr.rel (%p423) target = $region72
        $region71: #{tpu_custom_call.1} parent=55 // pred_region
          %426 = dma.done [#allocation9], 2048
        $region72: #{tpu_custom_call.1} parent=55 // pred_fallthru
          _
        %s427 = sand.u32 %s38, 1
        %s428 = scalar_lea.sflag [#allocation3], %s427
        %s429 = sand.u32 %s38, 1
        %s430 = smul.addr %s429, 16
        %s431 = scalar_lea.vmem [#allocation2], %s430
        %p432 = pneg %p51
        %p433 = pneg %p48
        %s434 = sand.u32 %s30, 1
        %s435 = scalar_lea.sflag [#allocation6], %s434
        %s436 = sand.u32 %s72, 1
        %s437 = smul.addr %s436, 8
        %s438 = scalar_lea.vmem [#allocation5], %s437
        %p439 = pneg %p85
        %p440 = pneg %p82
        %s441 = sand.u32 %s30, 1
        %s442 = scalar_lea.sflag [#allocation6], %s441
        %s443 = sand.u32 %s106, 1
        %s444 = smul.addr %s443, 8
        %s445 = scalar_lea.vmem [#allocation7], %s444
        %p446 = pneg %p119
        %p447 = pneg %p116
        %p448 = pneg %p140
        %p449 = pneg %p137
        %p450 = pneg %p161
        %p451 = pneg %p158
        %p452 = pneg %p182
        %p453 = pneg %p179
        %p454 = pneg %p203
        %p455 = pneg %p200
        %p456 = pneg %p224
        %p457 = pneg %p221
        %p458 = pneg %p245
        %p459 = pneg %p242
        %p460 = pneg %p271
        %p461 = pneg %p268
        %s462 = sand.u32 %s258, 1
        %s463 = scalar_lea.sflag [#allocation4], %s462
        %s464 = sand.u32 %s258, 1
        %s465 = smul.addr %s464, 16
        %s466 = scalar_lea.vmem [#allocation10], %s465
        %s467 = smul.u32 4, %s30
        %s468 = smul.u32 %s30, 2
        %s469 = ssub.s32 %s468, 1
        %p470 = scmp.gt.s32.totalorder %s469, 0
        %s471 = scalar_select %p470, %s469, 0
        %s472 = smul.u32 2, %s471
        %s473 = sadd.s32 %s30, 1
        %s474 = smul.u32 %s473, 2
        %p475 = scmp.lt.s32.totalorder %s474, 7
        %s476 = scalar_select %p475, %s474, 7
        %s477 = smul.u32 2, %s476
        %s478 = smul.u32 4, %s30
        %v479 = vld [vmem:[%s409] sm:$0xf]
        %v480 = vld [vmem:[%s409 + $0x4] sm:$0xf]
        %v481 = vld [vmem:[%s400] sm:$0xf]
        %v482 = vld [vmem:[%s400 + $0x4] sm:$0xf]
        %v483 = vld [vmem:[%s400 + $0x8] sm:$0xf]
        %v484 = vld [vmem:[%s400 + $0xc] sm:$0xf]
        %v485 = vld [vmem:[%s418] sm:$0xf]
        %v486 = vld [vmem:[%s418 + $0x4] sm:$0xf]
        %v489 = vunpack.c.l.b16 %v479
        %v490 = vunpack.c.l.b16 %v480
        %v491 = vpack.c.b16 %v490, %v489
        %v497 = vunpack.c.l.b16 %v481
        %v498 = vunpack.c.l.b16 %v482
        %v499 = vunpack.c.l.b16 %v483
        %v500 = vunpack.c.l.b16 %v484
        %v501 = vpack.c.b16 %v498, %v497
        %v502 = vpack.c.b16 %v500, %v499
        %v507 = vunpack.c.l.b16 %v485
        %v508 = vunpack.c.l.b16 %v486
        %v509 = vpack.c.b16 %v508, %v507
        %v511 = vunpack.c.h.bf16 %v491
        %v512 = vunpack.c.l.bf16 %v501
        %v513 = vunpack.c.h.bf16 %v501
        %v514 = vunpack.c.l.bf16 %v502
        %v515 = vunpack.c.h.bf16 %v502
        %v516 = vunpack.c.l.bf16 %v509
        %517 = vadd.xlane.f32.xlu0 %v511
        %v518 = vpop.xlane.xlu0 %517
        %519 = vadd.xlane.f32.xlu0 %v512
        %v520 = vpop.xlane.xlu0 %519
        %521 = vadd.xlane.f32.xlu0 %v513
        %v522 = vpop.xlane.xlu0 %521
        %523 = vadd.xlane.f32.xlu0 %v514
        %v524 = vpop.xlane.xlu0 %523
        %525 = vadd.xlane.f32.xlu0 %v515
        %v526 = vpop.xlane.xlu0 %525
        %527 = vadd.xlane.f32.xlu0 %v516
        %v528 = vpop.xlane.xlu0 %527
        %v529 = vrcp.pop 128.0
        %v530 = vmul.f32 %v518, %v529
        %v531 = vmul.f32 %v520, %v529
        %v532 = vmul.f32 %v522, %v529
        %v533 = vmul.f32 %v524, %v529
        %v534 = vmul.f32 %v526, %v529
        %v535 = vmul.f32 %v528, %v529
        %v536 = vsub.f32 %v511, %v530
        %v537 = vsub.f32 %v512, %v531
        %v538 = vsub.f32 %v513, %v532
        %v539 = vsub.f32 %v514, %v533
        %v540 = vsub.f32 %v515, %v534
        %v541 = vsub.f32 %v516, %v535
        %v542 = vmul.f32 %v536, %v536
        %v543 = vmul.f32 %v537, %v537
        %v544 = vmul.f32 %v538, %v538
        %v545 = vmul.f32 %v539, %v539
        %v546 = vmul.f32 %v540, %v540
        %v547 = vmul.f32 %v541, %v541
        %548 = vadd.xlane.f32.xlu0 %v542
        %v549 = vpop.xlane.xlu0 %548
        %550 = vadd.xlane.f32.xlu0 %v543
        %v551 = vpop.xlane.xlu0 %550
        %552 = vadd.xlane.f32.xlu0 %v544
        %v553 = vpop.xlane.xlu0 %552
        %554 = vadd.xlane.f32.xlu0 %v545
        %v555 = vpop.xlane.xlu0 %554
        %556 = vadd.xlane.f32.xlu0 %v546
        %v557 = vpop.xlane.xlu0 %556
        %558 = vadd.xlane.f32.xlu0 %v547
        %v559 = vpop.xlane.xlu0 %558
        %v560 = vmul.f32 %v549, %v529
        %v561 = vmul.f32 %v551, %v529
        %v562 = vmul.f32 %v553, %v529
        %v563 = vmul.f32 %v555, %v529
        %v564 = vmul.f32 %v557, %v529
        %v565 = vmul.f32 %v559, %v529
        %v566 = vadd.f32 %v560, 1e-05
        %v567 = vadd.f32 %v561, 1e-05
        %v568 = vadd.f32 %v562, 1e-05
        %v569 = vadd.f32 %v563, 1e-05
        %v570 = vadd.f32 %v564, 1e-05
        %v571 = vadd.f32 %v565, 1e-05
        %v572 = vrsqrt.pop %v566
        %v573 = vrsqrt.pop %v567
        %v574 = vrsqrt.pop %v568
        %v575 = vrsqrt.pop %v569
        %v576 = vrsqrt.pop %v570
        %v577 = vrsqrt.pop %v571
        %v578 = vmul.f32 %v536, %v572
        %v579 = vmul.f32 %v537, %v573
        %v580 = vmul.f32 %v538, %v574
        %v581 = vmul.f32 %v539, %v575
        %v582 = vmul.f32 %v540, %v576
        %v583 = vmul.f32 %v541, %v577
        %v584 = vld [vmem:[%s3] sm:$0x1]
        %v586 = vlaneseq
        %v587 = vshrl.u32 %v586, 7
        %v588 = vsub.s32 0, %v587
        %v589 = vrot.slane %v584, %v588
        %v591 = vmul.f32 %v578, %v589
        %v592 = vmul.f32 %v579, %v589
        %v593 = vmul.f32 %v580, %v589
        %v594 = vmul.f32 %v581, %v589
        %v595 = vmul.f32 %v582, %v589
        %v596 = vmul.f32 %v583, %v589
        %v597 = vld [vmem:[%s4] sm:$0x1]
        %v599 = vlaneseq
        %v600 = vshrl.u32 %v599, 7
        %v601 = vsub.s32 0, %v600
        %v602 = vrot.slane %v597, %v601
        %v604 = vadd.f32 %v591, %v602
        %v605 = vadd.f32 %v592, %v602
        %v606 = vadd.f32 %v593, %v602
        %v607 = vadd.f32 %v594, %v602
        %v608 = vadd.f32 %v595, %v602
        %v609 = vadd.f32 %v596, %v602
        %v610 = vlaneseq
        %v611 = vshrl.u32 %v610, 7
        %v612 = vadd.s32 %v611, 8
        %v613 = vadd.s32 %v611, 16
        %v614 = vadd.s32 %v611, 24
        %v615 = vadd.s32 %v611, 32
        %v616 = vadd.s32 %v611, 40
        %v617 = vadd.s32 %v611, 48
        %s618 = smul.u32 %s30, 32
        %s619 = ssub.s32 %s618, 16
        %v620 = vstv %s619
        %v621 = vadd.s32 %v612, %v620
        %v622 = vadd.s32 %v613, %v620
        %v623 = vadd.s32 %v614, %v620
        %v624 = vadd.s32 %v615, %v620
        %v625 = vadd.s32 %v616, %v620
        %v626 = vadd.s32 %v617, %v620
        %vm627 = vcmp.ge.s32.totalorder %v621, 0
        %vm628 = vcmp.ge.s32.totalorder %v622, 0
        %vm629 = vcmp.ge.s32.totalorder %v623, 0
        %vm630 = vcmp.ge.s32.totalorder %v624, 0
        %vm631 = vcmp.ge.s32.totalorder %v625, 0
        %vm632 = vcmp.ge.s32.totalorder %v626, 0
        %vm633 = vcmp.lt.s32.totalorder %v621, 100
        %vm634 = vcmp.lt.s32.totalorder %v622, 100
        %vm635 = vcmp.lt.s32.totalorder %v623, 100
        %vm636 = vcmp.lt.s32.totalorder %v624, 100
        %vm637 = vcmp.lt.s32.totalorder %v625, 100
        %vm638 = vcmp.lt.s32.totalorder %v626, 100
        %vm639 = vmand %vm627, %vm633
        %vm640 = vmand %vm628, %vm634
        %vm641 = vmand %vm629, %vm635
        %vm642 = vmand %vm630, %vm636
        %vm643 = vmand %vm631, %vm637
        %vm644 = vmand %vm632, %vm638
        %v645 = vsel %vm639, 1, 0
        %v646 = vsel %vm640, 1, 0
        %v647 = vsel %vm641, 1, 0
        %v648 = vsel %vm642, 1, 0
        %v649 = vsel %vm643, 1, 0
        %v650 = vsel %vm644, 1, 0
        %vm651 = vcmp.eq.s32.totalorder %v645, 1
        %vm652 = vcmp.eq.s32.totalorder %v646, 1
        %vm653 = vcmp.eq.s32.totalorder %v647, 1
        %vm654 = vcmp.eq.s32.totalorder %v648, 1
        %vm655 = vcmp.eq.s32.totalorder %v649, 1
        %vm656 = vcmp.eq.s32.totalorder %v650, 1
        %v657 = vsel %vm651, %v604, 0.0
        %v658 = vsel %vm652, %v605, 0.0
        %v659 = vsel %vm653, %v606, 0.0
        %v660 = vsel %vm654, %v607, 0.0
        %v661 = vsel %vm655, %v608, 0.0
        %v662 = vsel %vm656, %v609, 0.0
        %v663 = vld [vmem:[%s5] sm:$0x7]
        %v664 = vlaneseq
        %v665 = vshrl.u32 %v664, 7
        %v666 = vsub.s32 1, %v665
        %v667 = vrot.slane %v663, %v666
        %v668 = vmul.f32 %v658, %v667
        %v669 = vmul.f32 %v659, %v667
        %v670 = vmul.f32 %v660, %v667
        %v671 = vmul.f32 %v661, %v667
        %v672 = vlaneseq
        %v673 = vshrl.u32 %v672, 7
        %v674 = vsub.s32 0, %v673
        %v675 = vrot.slane %v663, %v674
        %v676 = vmul.f32 %v657, %v675
        %v677 = vmul.f32 %v658, %v675
        %v678 = vmul.f32 %v659, %v675
        %v679 = vmul.f32 %v660, %v675
        %v680 = vmul.f32 %v661, %v675
        %vm686 = vcmask 1043456
        %v687 = vrot.slane %v676, 4
        %v688 = vrot.slane %v677, 4
        %v689 = vsel %vm686, %v687, %v688
        %v690 = vrot.slane %v678, 4
        %v691 = vsel %vm686, %v688, %v690
        %v692 = vrot.slane %v679, 4
        %v693 = vsel %vm686, %v690, %v692
        %v694 = vrot.slane %v680, 4
        %v695 = vsel %vm686, %v692, %v694
        %v700 = vadd.f32 %v668, %v689
        %v701 = vadd.f32 %v669, %v691
        %v702 = vadd.f32 %v670, %v693
        %v703 = vadd.f32 %v671, %v695
        %v704 = vlaneseq
        %v705 = vshrl.u32 %v704, 7
        %v706 = vsub.s32 2, %v705
        %v707 = vrot.slane %v663, %v706
        %v708 = vmul.f32 %v658, %v707
        %v709 = vmul.f32 %v659, %v707
        %v710 = vmul.f32 %v660, %v707
        %v711 = vmul.f32 %v661, %v707
        %v712 = vmul.f32 %v662, %v707
        %v718 = vrot.slane %v708, 4
        %v719 = vrot.slane %v709, 4
        %v720 = vsel %vm686, %v718, %v719
        %v721 = vrot.slane %v710, 4
        %v722 = vsel %vm686, %v719, %v721
        %v723 = vrot.slane %v711, 4
        %v724 = vsel %vm686, %v721, %v723
        %v725 = vrot.slane %v712, 4
        %v726 = vsel %vm686, %v723, %v725
        %v731 = vadd.f32 %v700, %v720
        %v732 = vadd.f32 %v701, %v722
        %v733 = vadd.f32 %v702, %v724
        %v734 = vadd.f32 %v703, %v726
        %v735 = vld [vmem:[%s6] sm:$0x1]
        %v737 = vlaneseq
        %v738 = vshrl.u32 %v737, 7
        %v739 = vsub.s32 0, %v738
        %v740 = vrot.slane %v735, %v739
        %v742 = vadd.f32 %v731, %v740
        %v743 = vadd.f32 %v732, %v740
        %v744 = vadd.f32 %v733, %v740
        %v745 = vadd.f32 %v734, %v740
        %v746 = vmax.f32 %v742, 0.0
        %v747 = vmax.f32 %v743, 0.0
        %v748 = vmax.f32 %v744, 0.0
        %v749 = vmax.f32 %v745, 0.0
        %v750 = vld [vmem:[#allocation8] sm:$0xff]
        %v751 = vld [vmem:[#allocation8 + $0x8] sm:$0xff]
        %v752 = vld [vmem:[#allocation8 + $0x10] sm:$0xff]
        %v753 = vld [vmem:[#allocation8 + $0x18] sm:$0xff]
        %v754 = vld [vmem:[#allocation8 + $0x20] sm:$0xff]
        %v755 = vld [vmem:[#allocation8 + $0x28] sm:$0xff]
        %v756 = vld [vmem:[#allocation8 + $0x30] sm:$0xff]
        %v757 = vld [vmem:[#allocation8 + $0x38] sm:$0xff]
        %v758 = vld [vmem:[#allocation8 + $0x40] sm:$0xff]
        %v759 = vld [vmem:[#allocation8 + $0x48] sm:$0xff]
        %v760 = vld [vmem:[#allocation8 + $0x50] sm:$0xff]
        %v761 = vld [vmem:[#allocation8 + $0x58] sm:$0xff]
        %v762 = vld [vmem:[#allocation8 + $0x60] sm:$0xff]
        %v763 = vld [vmem:[#allocation8 + $0x68] sm:$0xff]
        %v764 = vld [vmem:[#allocation8 + $0x70] sm:$0xff]
        %v765 = vld [vmem:[#allocation8 + $0x78] sm:$0xff]
        %v766 = vld [vmem:[%s8] sm:$0x1]
        %v768 = vlaneseq
        %v769 = vshrl.u32 %v768, 7
        %v770 = vsub.s32 0, %v769
        %v771 = vrot.slane %v766, %v770
        %773 = vmatprep.subr.mxu0 0.0
        %774 = vmatpush1.msra.mxu0 %v750
        %775 = vmatprep.subr.mxu0 0.0
        %776 = vmatpush1.msra.mxu0 %v751
        %777 = vmatprep.subr.mxu0 0.0
        %778 = vmatpush1.msra.mxu0 %v752
        %779 = vmatprep.subr.mxu0 0.0
        %780 = vmatpush1.msra.mxu0 %v753
        %781 = vmatprep.subr.mxu0 0.0
        %782 = vmatpush1.msra.mxu0 %v754
        %783 = vmatprep.subr.mxu0 0.0
        %784 = vmatpush1.msra.mxu0 %v755
        %785 = vmatprep.subr.mxu0 0.0
        %786 = vmatpush1.msra.mxu0 %v756
        %787 = vmatprep.subr.mxu0 0.0
        %788 = vmatpush1.msra.mxu0 %v757
        %789 = vmatprep.subr.mxu0 0.0
        %790 = vmatpush1.msra.mxu0 %v758
        %791 = vmatprep.subr.mxu0 0.0
        %792 = vmatpush1.msra.mxu0 %v759
        %793 = vmatprep.subr.mxu0 0.0
        %794 = vmatpush1.msra.mxu0 %v760
        %795 = vmatprep.subr.mxu0 0.0
        %796 = vmatpush1.msra.mxu0 %v761
        %797 = vmatprep.subr.mxu0 0.0
        %798 = vmatpush1.msra.mxu0 %v762
        %799 = vmatprep.subr.mxu0 0.0
        %800 = vmatpush1.msra.mxu0 %v763
        %801 = vmatprep.subr.mxu0 0.0
        %802 = vmatpush1.msra.mxu0 %v764
        %803 = vmatprep.subr.mxu0 0.0
        %804 = vmatpush1.msra.mxu0 %v765
        %805 = vmatprep.subr.mxu0 0.0
        %806 = vmatpush1.msra.mxu0 0.0
        %807 = vmatprep.subr.mxu0 0.0
        %808 = vmatpush1.msra.mxu0 0.0
        %809 = vmatprep.subr.mxu0 0.0
        %810 = vmatpush1.msra.mxu0 0.0
        %811 = vmatprep.subr.mxu0 0.0
        %812 = vmatpush1.msra.mxu0 0.0
        %813 = vmatprep.subr.mxu0 0.0
        %814 = vmatpush1.msra.mxu0 0.0
        %815 = vmatprep.subr.mxu0 0.0
        %816 = vmatpush1.msra.mxu0 0.0
        %817 = vmatprep.subr.mxu0 0.0
        %818 = vmatpush1.msra.mxu0 0.0
        %819 = vmatprep.subr.mxu0 0.0
        %820 = vmatpush1.msra.mxu0 0.0
        %821 = vmatprep.subr.mxu0 0.0
        %822 = vmatpush1.msra.mxu0 0.0
        %823 = vmatprep.subr.mxu0 0.0
        %824 = vmatpush1.msra.mxu0 0.0
        %825 = vmatprep.subr.mxu0 0.0
        %826 = vmatpush1.msra.mxu0 0.0
        %827 = vmatprep.subr.mxu0 0.0
        %828 = vmatpush1.msra.mxu0 0.0
        %829 = vmatprep.subr.mxu0 0.0
        %830 = vmatpush1.msra.mxu0 0.0
        %831 = vmatprep.subr.mxu0 0.0
        %832 = vmatpush1.msra.mxu0 0.0
        %833 = vmatprep.subr.mxu0 0.0
        %834 = vmatpush1.msra.mxu0 0.0
        %835 = vmatprep.subr.mxu0 0.0
        %836 = vmatpush1.msra.mxu0 0.0
        %837 = vmatprep.mubr.f32.mxu0 0.0
        %838 = vmatmul.mubr.f32.gmra.mrb[0].mxu0 %v746
        %v839 = vpop.f32.mrb[0].mxu0
        %v840 = vadd.f32 %v771, %v839
        %v841 = vpop.f32.mrb[0].mxu0
        %842 = vmatprep.mubr.f32.mxu0 0.0
        %843 = vmatmul.mubr.f32.gmra.mrb[0].mxu0 %v747
        %v844 = vpop.f32.mrb[0].mxu0
        %v845 = vadd.f32 %v771, %v844
        %v846 = vpop.f32.mrb[0].mxu0
        %847 = vmatprep.mubr.f32.mxu0 0.0
        %848 = vmatmul.mubr.f32.gmra.mrb[0].mxu0 %v748
        %v849 = vpop.f32.mrb[0].mxu0
        %v850 = vadd.f32 %v771, %v849
        %v851 = vpop.f32.mrb[0].mxu0
        %852 = vmatprep.mubr.f32.mxu0 0.0
        %853 = vmatmul.mubr.f32.gmra.mrb[0].mxu0 %v749
        %v854 = vpop.f32.mrb[0].mxu0
        %v855 = vadd.f32 %v771, %v854
        %v856 = vpop.f32.mrb[0].mxu0
        %857 = vdwg.mxu0
        %v858 = vpack.c.bf16 %v845, %v840
        %v859 = vpack.c.bf16 %v855, %v850
        %v862 = vunpack.c.l.b16 %v858
        %v863 = vunpack.c.h.b16 %v858
        %v864 = vunpack.c.l.b16 %v859
        %v865 = vunpack.c.h.b16 %v859
        %v866 = vpack.c.b16 %v862, %v862
        %v867 = vpack.c.b16 %v863, %v863
        %v868 = vpack.c.b16 %v864, %v864
        %v869 = vpack.c.b16 %v865, %v865
        %874 = vst [vmem:[%s466] sm:$0xf] %v866
        %875 = vst [vmem:[%s466 + $0x4] sm:$0xf] %v867
        %876 = vst [vmem:[%s466 + $0x8] sm:$0xf] %v868
        %877 = vst [vmem:[%s466 + $0xc] sm:$0xf] %v869
        %s878 = sand.u32 %s258, 1
        %s879 = scalar_lea.sflag [#allocation4], %s878
        %s880 = sand.u32 %s258, 1
        %s881 = smul.addr %s880, 16
        %s882 = scalar_lea.vmem [#allocation10], %s881
        // Predicated region
        $region73: #{tpu_custom_call.1} parent=55 // pred_check
          %p883 = pneg %p268
        $region74: #{tpu_custom_call.1} parent=55 // pred_check_branch
          %885 = sbr.rel (%p883) target = $region76
        $region75: #{tpu_custom_call.1} parent=55 // pred_region
          %s886 = smul.u32 4, %s30
          %s888 = ssub.s32 256, 256
          %889 = vsyncadd %s879, %s888
          %s890 = smul.addr %s886, 64
          %s891 = scalar_lea.hbm %s9, %s890
          %s892 = sshll.u32 %s882, 4
          %s893 = int_to_ptr.vmem [resolvable:$true] %s892
          %898 = dma.vmem_to_hbm [thread:$0]  %s893, 256, %s891, %s879, 64, 64, 4
        $region76: #{tpu_custom_call.1} parent=55 // pred_fallthru
          _
      $region56: #{tpu_custom_call.1} parent=5 // pred_fallthru
        _
      %p899 = scmp.le.s32.totalorder 2, %s25
      // Predicated region
      $region77: #{tpu_custom_call.1} parent=5 // pred_check
        %p900 = pneg %p899
      $region78: #{tpu_custom_call.1} parent=5 // pred_check_branch
        %902 = sbr.rel (%p900) target = $region80
      $region79: #{tpu_custom_call.1} parent=5 // pred_region
        %s903 = ssub.s32 %s25, 2
        // Predicated region
        $region81: #{tpu_custom_call.1} parent=79 // pred_check
          %p904 = pneg %p274
        $region82: #{tpu_custom_call.1} parent=79 // pred_check_branch
          %906 = sbr.rel (%p904) target = $region84
        $region83: #{tpu_custom_call.1} parent=79 // pred_region
          %s907 = sand.u32 %s259, 1
          %s908 = scalar_lea.sflag [#allocation4], %s907
          %s909 = sand.u32 %s259, 1
          %s910 = smul.addr %s909, 16
          %s911 = scalar_lea.vmem [#allocation10], %s910
          %912 = dma.done %s908, 256
        $region84: #{tpu_custom_call.1} parent=79 // pred_fallthru
          _
      $region80: #{tpu_custom_call.1} parent=5 // pred_fallthru
        _
    $region6: #{tpu_custom_call.1} parent=1 // loop_footer
      %s29 = sadd.s32 1, %s25
    $region7: #{tpu_custom_call.1} parent=1 // loop_footer_branch
      %24 = sbr.rel target = $region3
    $region8: #{tpu_custom_call.1} parent=1 // loop_exit
      _
    %913 = vsyncpa [#allocation3], 1
    %s914 = scalar_lea.sflag [#allocation3], 1
    %915 = vsyncpa %s914, 1
    %916 = vsyncpa [#allocation6], 1
    %s917 = scalar_lea.sflag [#allocation6], 1
    %918 = vsyncpa %s917, 1
    %919 = vsyncpa [#allocation9], 1
    %920 = vsyncpa [#allocation4], 1
    %s921 = scalar_lea.sflag [#allocation4], 1
    %922 = vsyncpa %s921, 1

</llo_original>
